<compile_context>
chip_gen: v7x
topology: tpu7x:2x2x1
jax: 0.10.0
libtpu: 0.0.40
codegen_flags: <defaults>
</compile_context>

<pallas_src>
import functools

import jax
import jax.numpy as jnp
from jax.experimental import pallas as pl
from jax.experimental.pallas import tpu as pltpu

LANE = 128                      # TPU lane width; hidden feature dims are padded to this
LAYER_SIZES = (54, 40, 35, 30, 20)
NUM_LAYERS = 4


def _round_up(n, m):
    return ((n + m - 1) // m) * m


def _logsigmoid(v):
    # Numerically stable log(sigmoid(v)) = min(v, 0) - log1p(exp(-|v|)).
    # 2 transcendentals / element -- the minimum EUP work for this activation.
    return jnp.minimum(v, 0.0) - jnp.log1p(jnp.exp(-jnp.abs(v)))


def mlp_kernel(x_ref, w_ref, b_ref, o_ref, xpad_ref, *,
               act_dtype, in_features, num_classes):
    """One batch tile of the MLP.

    x_ref    : (TM, in_features)  f32   -- streamed, *unpadded* batch tile
    w_ref    : (4, 128, 128)      bf16  -- packed zero-padded weights, VMEM-resident
    b_ref    : (4, 1, 128)        f32   -- packed zero-padded biases,  VMEM-resident
    o_ref    : (TM, num_classes)  f32   -- narrow output block (full last dim)
    xpad_ref : (TM, 128)          bf16  -- VMEM staging buffer for lane padding
    """
    tm = xpad_ref.shape[0]
    # Lane-pad the input entirely in VMEM: zero the padding lanes (cheap VMEM
    # fill, done every step so it is safe under megacore grid sharding), then
    # drop the bf16-cast rows into lanes [:, :in_features].
    xpad_ref[:, in_features:] = jnp.zeros((tm, LANE - in_features), jnp.bfloat16)
    xpad_ref[:, :in_features] = x_ref[...].astype(jnp.bfloat16)
    h = xpad_ref[...]                                    # (TM, 128) bf16

    acc = None
    for l in range(NUM_LAYERS):                          # static unroll, 4 layers
        # MXU matmul in bf16 with f32 accumulation.
        acc = jnp.dot(h, w_ref[l], preferred_element_type=jnp.float32)
        if l < NUM_LAYERS - 1:
            # Bias add + logsigmoid in act_dtype: bf16 on v6e/v7x (bf16 VPU/EUP),
            # f32 on v5e and older.
            v = acc.astype(act_dtype) + b_ref[l].astype(act_dtype)
            h = _logsigmoid(v).astype(jnp.bfloat16)      # bf16 for the next MXU pass
        else:
            acc = acc + b_ref[l]                         # final layer stays f32
    o_ref[...] = acc[:, :num_classes]                    # narrow f32 store


def pack_params(params):
    """Pack 4 (w[in,out], b[1,out]) pairs into two zero-padded stacked arrays.

    Zero rows beyond each layer's true fan-in guarantee that padded activation
    lanes (which hold logsigmoid(0) != 0) contribute nothing downstream.
    """
    w_packed = jnp.zeros((NUM_LAYERS, LANE, LANE), jnp.float32)
    b_packed = jnp.zeros((NUM_LAYERS, 1, LANE), jnp.float32)
    for l, (w, b) in enumerate(params):
        fi, fo = w.shape
        w_packed = w_packed.at[l, :fi, :fo].set(w)
        b_packed = b_packed.at[l, 0, :fo].set(b.reshape(-1))
    return w_packed.astype(jnp.bfloat16), b_packed


def _choose_block_rows(batch, block_rows_max):
    """Balanced batch tile: multiple of 16 (native bf16 sublane tile), at most
    block_rows_max, sized so an 'unlucky' batch (e.g. 513 with max 512) does not
    pay DMA + compute for a nearly-empty extra tile."""
    block_rows_max = max(16, block_rows_max)
    n_tiles = max(1, -(-batch // block_rows_max))
    return _round_up(max(1, -(-batch // n_tiles)), 16)


def default_activation_dtype():
    """bf16 elementwise math on chips with bf16 VPU/EUP (v6e, v7x); f32 otherwise."""
    kind = jax.devices()[0].device_kind.lower()
    if "v6" in kind or "v7" in kind:
        return jnp.bfloat16
    return jnp.float32


@functools.partial(jax.jit, static_argnames=("num_classes", "block_rows", "act_dtype"))
def neural_network_forward(x, w_packed, b_packed, *, num_classes=20,
                           block_rows=2048, act_dtype=jnp.float32):
    """Full forward pass.  Batch is tiled over a 1-D 'parallel' grid; packed
    weights/biases are DMA'd once and stay VMEM-resident.

    block_rows: max rows per tile.  2048 amortizes the ~0.35 us/step pipeline
    overhead while using only a few MiB of VMEM (safe even on v5e's 16 MiB
    default scoped limit); pushing far beyond ~8K rows on v5e would need
    pltpu.CompilerParams(vmem_limit_bytes=...).  Don't use tiny values in prod.
    """
    B, F = x.shape
    tm = _choose_block_rows(B, block_rows)
    bp = _round_up(B, tm)
    xp = x if bp == B else jnp.pad(x, ((0, bp - B), (0, 0)))

    kernel = functools.partial(mlp_kernel, act_dtype=act_dtype,
                               in_features=F, num_classes=num_classes)
    out = pl.pallas_call(
        kernel,
        out_shape=jax.ShapeDtypeStruct((bp, num_classes), jnp.float32),
        grid_spec=pltpu.PrefetchScalarGridSpec(
            num_scalar_prefetch=0,
            grid=(bp // tm,),
            in_specs=[
                # Unpadded f32 rows stream straight from HBM (block last dim ==
                # full array dim, so 54 is legal); cast + pad happen in-kernel.
                pl.BlockSpec((tm, F), lambda i: (i, 0)),
                # Weights / biases: same block every step -> DMA'd once, resident.
                pl.BlockSpec((NUM_LAYERS, LANE, LANE), lambda i: (0, 0, 0)),
                pl.BlockSpec((NUM_LAYERS, 1, LANE), lambda i: (0, 0, 0)),
            ],
            # Narrow f32 output (full last dim == num_classes): 80 B/row instead
            # of 512 B/row of padded lanes, and no lane-slice pass in the wrapper.
            out_specs=pl.BlockSpec((tm, num_classes), lambda i: (i, 0)),
            scratch_shapes=[pltpu.VMEM((tm, LANE), jnp.bfloat16)],
        ),
        compiler_params=pltpu.CompilerParams(
            dimension_semantics=("parallel",),   # shard batch tiles across TCs (v7x)
        ),
    )(xp, w_packed, b_packed)
    return out if bp == B else out[:B]


def init_params(key, input_size=54, num_classes=20):
    """Deterministic PyTorch-style init. Weights [in, out]; biases [1, out]."""
    layer_sizes = [input_size, 40, 35, 30, num_classes]
    params = []
    for i in range(NUM_LAYERS):
        fan_in, fan_out = layer_sizes[i], layer_sizes[i + 1]
        key, kw, kb = jax.random.split(key, 3)
        bound = 1.0 / jnp.sqrt(jnp.float32(fan_in))
        w = jax.random.uniform(kw, (fan_in, fan_out), jnp.float32, -bound, bound)
        b = jax.random.uniform(kb, (1, fan_out), jnp.float32, -bound, bound)
        params.append((w, b))
    return params


def reference_forward(x, params):
    """Pure-JAX f32 reference of the PyTorch forward pass."""
    (w1, b1), (w2, b2), (w3, b3), (w4, b4) = params
    h = _logsigmoid(x @ w1 + b1)
    h = _logsigmoid(h @ w2 + b2)
    h = _logsigmoid(h @ w3 + b3)
    return h @ w4 + b4


def reference_forward_kernel_numerics(x, params, act_dtype=jnp.float32):
    """Pure-JAX reference matching the kernel recipe: bf16 MXU inputs, f32
    accumulation, bias add + logsigmoid in act_dtype, f32 final layer."""
    def mm(a, w):
        return jnp.dot(a.astype(jnp.bfloat16), w.astype(jnp.bfloat16),
                       preferred_element_type=jnp.float32)
    h = x
    for i, (w, b) in enumerate(params):
        z = mm(h, w)
        if i < len(params) - 1:
            h = _logsigmoid(z.astype(act_dtype) + b.astype(act_dtype)).astype(jnp.float32)
        else:
            h = z + b
    return h


if __name__ == "__main__":
    key = jax.random.PRNGKey(0)
    key, kx = jax.random.split(key)

    batch = 64            # small demo batch; block_rows=16 exercises grid=(4,)
    input_size = 54       # Rubik's-cube state encoding size
    num_classes = 20

    x = jax.random.uniform(kx, (batch, input_size), jnp.float32)
    params = init_params(key, input_size, num_classes)
    w_packed, b_packed = pack_params(params)
    act_dtype = default_activation_dtype()   # bf16 on v6e/v7x, f32 on v5e/older

    out = neural_network_forward(x, w_packed, b_packed, num_classes=num_classes,
                                 block_rows=16, act_dtype=act_dtype)
    out = jax.block_until_ready(out)

    ref_match = reference_forward_kernel_numerics(x, params, act_dtype)  # kernel numerics
    ref_f32 = reference_forward(x, params)                               # module f32 math

    assert out.shape == (batch, num_classes)
    assert jnp.allclose(out, ref_match, atol=2e-2, rtol=2e-2), "mismatch vs kernel-numerics reference"
    assert jnp.allclose(out, ref_f32, atol=5e-2, rtol=5e-2), "mismatch vs f32 reference"

    # TODO(synk): the module defines nn.LogSoftmax but never applies it in
    # forward(), so it is intentionally not implemented here.
    print("KERNEL_OK")
</pallas_src>

<mosaic_0001>
module attributes {stable_mosaic.version = 11 : i64} {
  func.func @mlp_kernel(%arg0: i32, %arg1: memref<16x54xf32, #tpu.memory_space<vmem>>, %arg2: memref<4x128x128xbf16, #tpu.memory_space<vmem>>, %arg3: memref<4x1x128xf32, #tpu.memory_space<vmem>>, %arg4: memref<16x20xf32, #tpu.memory_space<vmem>>, %arg5: memref<16x128xbf16, #tpu.memory_space<vmem>>) attributes {dimension_semantics = [#tpu.dimension_semantics<parallel>], iteration_bounds = array<i64: 4>, scalar_prefetch = 0 : i64, scratch_operands = 1 : i64, tpu.core_type = #tpu.core_type<tc>, window_params = [{transform_indices = @transform_0, window_bounds = array<i64: 16, 54>}, {pipeline_mode = #tpu.pipeline_mode<synchronous>, transform_indices = @transform_1, window_bounds = array<i64: 4, 128, 128>}, {pipeline_mode = #tpu.pipeline_mode<synchronous>, transform_indices = @transform_2, window_bounds = array<i64: 4, 1, 128>}, {transform_indices = @transform_3, window_bounds = array<i64: 16, 20>}]} {
    %cst = arith.constant 0.000000e+00 : bf16
    %0 = vector.broadcast %cst : bf16 to vector<16x74xbf16>
    %c0 = arith.constant 0 : index
    %c54 = arith.constant 54 : index
    %1 = vector.load %arg5[%c0, %c54] : memref<16x128xbf16, #tpu.memory_space<vmem>>, vector<16x74xbf16>
    tpu.vector_store %arg5[%c0, %c54], %0 {strides = array<i32>} : memref<16x128xbf16, #tpu.memory_space<vmem>>, vector<16x74xbf16>,
    %c0_0 = arith.constant 0 : index
    %c0_1 = arith.constant 0 : index
    %2 = vector.load %arg1[%c0_0, %c0_1] : memref<16x54xf32, #tpu.memory_space<vmem>>, vector<16x54xf32>
    %3 = arith.truncf %2 : vector<16x54xf32> to vector<16x54xbf16>
    %c0_2 = arith.constant 0 : index
    %c0_3 = arith.constant 0 : index
    %4 = vector.load %arg5[%c0_2, %c0_3] : memref<16x128xbf16, #tpu.memory_space<vmem>>, vector<16x54xbf16>
    tpu.vector_store %arg5[%c0_2, %c0_3], %3 {strides = array<i32>} : memref<16x128xbf16, #tpu.memory_space<vmem>>, vector<16x54xbf16>,
    %c0_4 = arith.constant 0 : index
    %c0_5 = arith.constant 0 : index
    %5 = vector.load %arg5[%c0_4, %c0_5] : memref<16x128xbf16, #tpu.memory_space<vmem>>, vector<16x128xbf16>
    %c0_6 = arith.constant 0 : index
    %c0_7 = arith.constant 0 : index
    %c0_8 = arith.constant 0 : index
    %6 = vector.load %arg2[%c0_6, %c0_7, %c0_8] : memref<4x128x128xbf16, #tpu.memory_space<vmem>>, vector<1x128x128xbf16>
    %7 = vector.shape_cast %6 : vector<1x128x128xbf16> to vector<128x128xbf16>
    %cst_9 = arith.constant dense<0.000000e+00> : vector<16x128xf32>
    %8 = tpu.matmul %5, %7, %cst_9 {dimension_numbers = #tpu.dot_dimension_numbers<[1], [0], [0], [1], [0, 0, 1, 1], [], []>} : vector<16x128xbf16>, vector<128x128xbf16>, vector<16x128xf32> -> vector<16x128xf32>
    %c0_10 = arith.constant 0 : index
    %c0_11 = arith.constant 0 : index
    %c0_12 = arith.constant 0 : index
    %9 = vector.load %arg3[%c0_10, %c0_11, %c0_12] : memref<4x1x128xf32, #tpu.memory_space<vmem>>, vector<1x1x128xf32>
    %10 = vector.shape_cast %9 : vector<1x1x128xf32> to vector<1x128xf32>
    %11 = vector.broadcast %10 : vector<1x128xf32> to vector<16x128xf32>
    %12 = arith.addf %8, %11 : vector<16x128xf32>
    %cst_13 = arith.constant 0.000000e+00 : f32
    %13 = vector.broadcast %cst_13 : f32 to vector<16x128xf32>
    %14 = arith.minimumf %12, %13 : vector<16x128xf32>
    %15 = math.absf %12 : vector<16x128xf32>
    %cst_14 = arith.constant 0.000000e+00 : f32
    %16 = vector.broadcast %cst_14 : f32 to vector<16x128xf32>
    %17 = arith.subf %16, %15 : vector<16x128xf32>
    %18 = math.exp %17 : vector<16x128xf32>
    %19 = math.log1p %18 : vector<16x128xf32>
    %20 = arith.subf %14, %19 : vector<16x128xf32>
    %21 = arith.truncf %20 : vector<16x128xf32> to vector<16x128xbf16>
    %c1 = arith.constant 1 : index
    %c0_15 = arith.constant 0 : index
    %c0_16 = arith.constant 0 : index
    %22 = vector.load %arg2[%c1, %c0_15, %c0_16] : memref<4x128x128xbf16, #tpu.memory_space<vmem>>, vector<1x128x128xbf16>
    %23 = vector.shape_cast %22 : vector<1x128x128xbf16> to vector<128x128xbf16>
    %cst_17 = arith.constant dense<0.000000e+00> : vector<16x128xf32>
    %24 = tpu.matmul %21, %23, %cst_17 {dimension_numbers = #tpu.dot_dimension_numbers<[1], [0], [0], [1], [0, 0, 1, 1], [], []>} : vector<16x128xbf16>, vector<128x128xbf16>, vector<16x128xf32> -> vector<16x128xf32>
    %c1_18 = arith.constant 1 : index
    %c0_19 = arith.constant 0 : index
    %c0_20 = arith.constant 0 : index
    %25 = vector.load %arg3[%c1_18, %c0_19, %c0_20] : memref<4x1x128xf32, #tpu.memory_space<vmem>>, vector<1x1x128xf32>
    %26 = vector.shape_cast %25 : vector<1x1x128xf32> to vector<1x128xf32>
    %27 = vector.broadcast %26 : vector<1x128xf32> to vector<16x128xf32>
    %28 = arith.addf %24, %27 : vector<16x128xf32>
    %cst_21 = arith.constant 0.000000e+00 : f32
    %29 = vector.broadcast %cst_21 : f32 to vector<16x128xf32>
    %30 = arith.minimumf %28, %29 : vector<16x128xf32>
    %31 = math.absf %28 : vector<16x128xf32>
    %cst_22 = arith.constant 0.000000e+00 : f32
    %32 = vector.broadcast %cst_22 : f32 to vector<16x128xf32>
    %33 = arith.subf %32, %31 : vector<16x128xf32>
    %34 = math.exp %33 : vector<16x128xf32>
    %35 = math.log1p %34 : vector<16x128xf32>
    %36 = arith.subf %30, %35 : vector<16x128xf32>
    %37 = arith.truncf %36 : vector<16x128xf32> to vector<16x128xbf16>
    %c2 = arith.constant 2 : index
    %c0_23 = arith.constant 0 : index
    %c0_24 = arith.constant 0 : index
    %38 = vector.load %arg2[%c2, %c0_23, %c0_24] : memref<4x128x128xbf16, #tpu.memory_space<vmem>>, vector<1x128x128xbf16>
    %39 = vector.shape_cast %38 : vector<1x128x128xbf16> to vector<128x128xbf16>
    %cst_25 = arith.constant dense<0.000000e+00> : vector<16x128xf32>
    %40 = tpu.matmul %37, %39, %cst_25 {dimension_numbers = #tpu.dot_dimension_numbers<[1], [0], [0], [1], [0, 0, 1, 1], [], []>} : vector<16x128xbf16>, vector<128x128xbf16>, vector<16x128xf32> -> vector<16x128xf32>
    %c2_26 = arith.constant 2 : index
    %c0_27 = arith.constant 0 : index
    %c0_28 = arith.constant 0 : index
    %41 = vector.load %arg3[%c2_26, %c0_27, %c0_28] : memref<4x1x128xf32, #tpu.memory_space<vmem>>, vector<1x1x128xf32>
    %42 = vector.shape_cast %41 : vector<1x1x128xf32> to vector<1x128xf32>
    %43 = vector.broadcast %42 : vector<1x128xf32> to vector<16x128xf32>
    %44 = arith.addf %40, %43 : vector<16x128xf32>
    %cst_29 = arith.constant 0.000000e+00 : f32
    %45 = vector.broadcast %cst_29 : f32 to vector<16x128xf32>
    %46 = arith.minimumf %44, %45 : vector<16x128xf32>
    %47 = math.absf %44 : vector<16x128xf32>
    %cst_30 = arith.constant 0.000000e+00 : f32
    %48 = vector.broadcast %cst_30 : f32 to vector<16x128xf32>
    %49 = arith.subf %48, %47 : vector<16x128xf32>
    %50 = math.exp %49 : vector<16x128xf32>
    %51 = math.log1p %50 : vector<16x128xf32>
    %52 = arith.subf %46, %51 : vector<16x128xf32>
    %53 = arith.truncf %52 : vector<16x128xf32> to vector<16x128xbf16>
    %c3 = arith.constant 3 : index
    %c0_31 = arith.constant 0 : index
    %c0_32 = arith.constant 0 : index
    %54 = vector.load %arg2[%c3, %c0_31, %c0_32] : memref<4x128x128xbf16, #tpu.memory_space<vmem>>, vector<1x128x128xbf16>
    %55 = vector.shape_cast %54 : vector<1x128x128xbf16> to vector<128x128xbf16>
    %cst_33 = arith.constant dense<0.000000e+00> : vector<16x128xf32>
    %56 = tpu.matmul %53, %55, %cst_33 {dimension_numbers = #tpu.dot_dimension_numbers<[1], [0], [0], [1], [0, 0, 1, 1], [], []>} : vector<16x128xbf16>, vector<128x128xbf16>, vector<16x128xf32> -> vector<16x128xf32>
    %c3_34 = arith.constant 3 : index
    %c0_35 = arith.constant 0 : index
    %c0_36 = arith.constant 0 : index
    %57 = vector.load %arg3[%c3_34, %c0_35, %c0_36] : memref<4x1x128xf32, #tpu.memory_space<vmem>>, vector<1x1x128xf32>
    %58 = vector.shape_cast %57 : vector<1x1x128xf32> to vector<1x128xf32>
    %59 = vector.broadcast %58 : vector<1x128xf32> to vector<16x128xf32>
    %60 = arith.addf %56, %59 : vector<16x128xf32>
    %61 = vector.extract_strided_slice %60 {offsets = [0, 0], sizes = [16, 20], strides = [1, 1]} : vector<16x128xf32> to vector<16x20xf32>
    %c0_37 = arith.constant 0 : index
    %c0_38 = arith.constant 0 : index
    %62 = vector.load %arg4[%c0_37, %c0_38] : memref<16x20xf32, #tpu.memory_space<vmem>>, vector<16x20xf32>
    tpu.vector_store %arg4[%c0_37, %c0_38], %61 {strides = array<i32>} : memref<16x20xf32, #tpu.memory_space<vmem>>, vector<16x20xf32>,
    return
  }
  func.func @transform_0(%arg0: i32) -> (i32, i32) {
    %c0_i32 = arith.constant 0 : i32
    %c0_i32_0 = arith.constant 0 : i32
    return %arg0, %c0_i32 : i32, i32
  }
  func.func @transform_1(%arg0: i32) -> (i32, i32, i32) {
    %c0_i32 = arith.constant 0 : i32
    %c0_i32_0 = arith.constant 0 : i32
    %c0_i32_1 = arith.constant 0 : i32
    %c0_i32_2 = arith.constant 0 : i32
    return %c0_i32, %c0_i32_0, %c0_i32_1 : i32, i32, i32
  }
  func.func @transform_2(%arg0: i32) -> (i32, i32, i32) {
    %c0_i32 = arith.constant 0 : i32
    %c0_i32_0 = arith.constant 0 : i32
    %c0_i32_1 = arith.constant 0 : i32
    %c0_i32_2 = arith.constant 0 : i32
    return %c0_i32, %c0_i32_0, %c0_i32_1 : i32, i32, i32
  }
  func.func @transform_3(%arg0: i32) -> (i32, i32) {
    %c0_i32 = arith.constant 0 : i32
    %c0_i32_0 = arith.constant 0 : i32
    return %arg0, %c0_i32 : i32, i32
  }
}

</mosaic_0001>

<llo_original>
// kernel: neural_network_forward.1
$region0: #{neural_network_forward.1}
  #allocation0 [shape = 'u32[]', space=smem, size = 0x4, offset = 0x4, fixed_abs, tag = 'smem constant byte address 0x4 - core index']
  #allocation1 [shape = 'u32[144,128]{1,0:T(1,128)}', space=vmem, size = 0x12000, scoped, tag = 'internal scratch']
  #allocation2 [shape = 'bf16[16,128]{1,0:T(16,128)(2,1)}', space=vmem, size = 0x1000, scoped, tag = 'scratch operand']
  %s0 = inlined_call_operand.vmem [shape: f32[64,54], index: 0, kind: input, shape index: {}]
  %s1 = inlined_call_operand.hbm [shape: bf16[4,128,128], index: 1, kind: input, shape index: {}]
  %s2 = inlined_call_operand.vmem [shape: f32[4,1,128], index: 2, kind: input, shape index: {}]
  %s3 = inlined_call_operand.vmem [shape: f32[64,20], index: 3, kind: output, shape index: {}]
  %s4 = sld [smem:[#allocation0]]
  $region49: #{neural_network_forward.1} parent=0
    _
  %s6 = ssub.s32 1, %s4
  %s7 = scalar_select 0, %s6, %s4
  $region1: #{neural_network_forward.1} parent=0
    #allocation3 [shape = 'u8[131072]{0}', space=vmem, size = 0x20000, scoped, tag = 'input window, operand 1, single buffered']
    #allocation4 [shape = 's32[2]{0}', space=sflag, size = 0x8, scoped, tag = 'scoped memory for neural_network_forward.1']
    %8 = vsyncpa [#allocation4], 0
    loop: start=0, step=1, limit=6
    $region2: #{neural_network_forward.1} parent=1 // loop_pre_header
      _
    $region3: #{neural_network_forward.1} parent=1 // loop_header
      %s10 = sphi 0, %s14
      %p11 = scmp.ge.s32.totalorder %s10, 6
      %s20 = sphi 0, %s22
      %s23 = sphi 0, %s20
      %s24 = sphi 0, %s23
      %s40 = sphi 0, %s24
      %s44 = sphi 0, %s44
      %s46 = sphi 0, %s44
      %s47 = sphi 0, %s46
      %s61 = sphi 0, %s47
      %s65 = sphi 0, %s65
      %s67 = sphi 0, %s65
      %s68 = sphi 0, %s67
      %s82 = sphi 0, %s68
      %s88 = sphi 0, %s90
      %s91 = sphi 0, %s88
      %s92 = sphi 0, %s91
      %s108 = sphi 0, %s92
    $region4: #{neural_network_forward.1} parent=1 // loop_header_branch
      %13 = sbr.rel (%p11) target = $region8
    $region5: #{neural_network_forward.1} parent=1 // loop_body
      %s15 = ssub.s32 %s10, 1
      %s16 = ssub.s32 %s10, 2
      %s17 = sadd.s32 %s10, 1
      %s18 = ssub.s32 %s10, %s17
      %p19 = scmp.eq.s32.totalorder %s18, 0
      %s21 = sadd.s32 %s20, 1
      %s22 = scalar_select %p19, %s20, %s21
      %p25 = pneg %p19
      %p26 = scmp.eq.s32.totalorder %s10, 3
      %p27 = por %p25, %p26
      %p28 = scmp.ne.s32.totalorder %s20, %s23
      %p29 = scmp.eq.s32.totalorder %s10, 0
      %p30 = por %p28, %p29
      %p31 = scmp.ne.s32.totalorder %s20, %s23
      %p32 = scmp.eq.s32.totalorder %s15, 3
      %p33 = por %p31, %p32
      %p34 = scmp.ne.s32.totalorder %s23, %s24
      %p35 = scmp.eq.s32.totalorder %s15, 0
      %p36 = por %p34, %p35
      %p37 = scmp.ne.s32.totalorder %s23, %s24
      %p38 = scmp.eq.s32.totalorder %s16, 3
      %p39 = por %p37, %p38
      %p41 = scmp.ne.s32.totalorder %s24, %s40
      %p42 = scmp.eq.s32.totalorder %s16, 0
      %p43 = por %p41, %p42
      %s45 = sadd.s32 %s44, 1
      %p48 = scmp.eq.s32.totalorder %s10, 3
      %p49 = scmp.ne.s32.totalorder %s44, %s46
      %p50 = scmp.eq.s32.totalorder %s10, 0
      %p51 = por %p49, %p50
      %p52 = scmp.ne.s32.totalorder %s44, %s46
      %p53 = scmp.eq.s32.totalorder %s15, 3
      %p54 = por %p52, %p53
      %p55 = scmp.ne.s32.totalorder %s46, %s47
      %p56 = scmp.eq.s32.totalorder %s15, 0
      %p57 = por %p55, %p56
      %p58 = scmp.ne.s32.totalorder %s46, %s47
      %p59 = scmp.eq.s32.totalorder %s16, 3
      %p60 = por %p58, %p59
      %p62 = scmp.ne.s32.totalorder %s47, %s61
      %p63 = scmp.eq.s32.totalorder %s16, 0
      %p64 = por %p62, %p63
      %s66 = sadd.s32 %s65, 1
      %p69 = scmp.eq.s32.totalorder %s10, 3
      %p70 = scmp.ne.s32.totalorder %s65, %s67
      %p71 = scmp.eq.s32.totalorder %s10, 0
      %p72 = por %p70, %p71
      %p73 = scmp.ne.s32.totalorder %s65, %s67
      %p74 = scmp.eq.s32.totalorder %s15, 3
      %p75 = por %p73, %p74
      %p76 = scmp.ne.s32.totalorder %s67, %s68
      %p77 = scmp.eq.s32.totalorder %s15, 0
      %p78 = por %p76, %p77
      %p79 = scmp.ne.s32.totalorder %s67, %s68
      %p80 = scmp.eq.s32.totalorder %s16, 3
      %p81 = por %p79, %p80
      %p83 = scmp.ne.s32.totalorder %s68, %s82
      %p84 = scmp.eq.s32.totalorder %s16, 0
      %p85 = por %p83, %p84
      %s86 = ssub.s32 %s10, %s17
      %p87 = scmp.eq.s32.totalorder %s86, 0
      %s89 = sadd.s32 %s88, 1
      %s90 = scalar_select %p87, %s88, %s89
      %p93 = pneg %p87
      %p94 = scmp.eq.s32.totalorder %s10, 3
      %p95 = por %p93, %p94
      %p96 = scmp.ne.s32.totalorder %s88, %s91
      %p97 = scmp.eq.s32.totalorder %s10, 0
      %p98 = por %p96, %p97
      %p99 = scmp.ne.s32.totalorder %s88, %s91
      %p100 = scmp.eq.s32.totalorder %s15, 3
      %p101 = por %p99, %p100
      %p102 = scmp.ne.s32.totalorder %s91, %s92
      %p103 = scmp.eq.s32.totalorder %s15, 0
      %p104 = por %p102, %p103
      %p105 = scmp.ne.s32.totalorder %s91, %s92
      %p106 = scmp.eq.s32.totalorder %s16, 3
      %p107 = por %p105, %p106
      %p109 = scmp.ne.s32.totalorder %s92, %s108
      %p110 = scmp.eq.s32.totalorder %s16, 0
      %p111 = por %p109, %p110
      %p112 = scmp.le.s32.totalorder 1, %s10
      %p113 = scmp.lt.s32.totalorder %s10, 5
      %p114 = pnand %p112, %p113
      %p115 = pneg %p114
      // Predicated region
      $region9: #{neural_network_forward.1} parent=5 // pred_check
        _
      $region10: #{neural_network_forward.1} parent=5 // pred_check_branch
        %117 = sbr.rel (%p114) target = $region12
      $region11: #{neural_network_forward.1} parent=5 // pred_region
        %s118 = ssub.s32 %s10, 1
        // Predicated region
        $region13: #{neural_network_forward.1} parent=11 // pred_check
          %p119 = pneg %p57
        $region14: #{neural_network_forward.1} parent=11 // pred_check_branch
          %121 = sbr.rel (%p119) target = $region16
        $region15: #{neural_network_forward.1} parent=11 // pred_region
          %s123 = ssub.s32 4096, 4096
          %124 = vsyncadd [#allocation4], %s123
          %s125 = sshll.u32 [#allocation3], 4
          %s126 = int_to_ptr.vmem [resolvable:$true] %s125
          %131 = dma.hbm_to_vmem [thread:$0]  %s1, 4096, %s126, [#allocation4], 64, 64, 4
        $region16: #{neural_network_forward.1} parent=11 // pred_fallthru
          _
        // Predicated region
        $region17: #{neural_network_forward.1} parent=11 // pred_check
          %p132 = pneg %p78
        $region18: #{neural_network_forward.1} parent=11 // pred_check_branch
          %134 = sbr.rel (%p132) target = $region20
        $region19: #{neural_network_forward.1} parent=11 // pred_region
          _
        $region20: #{neural_network_forward.1} parent=11 // pred_fallthru
          _
      $region12: #{neural_network_forward.1} parent=5 // pred_fallthru
        _
      %p135 = scmp.lt.s32.totalorder %s10, 4
      // Predicated region
      $region21: #{neural_network_forward.1} parent=5 // pred_check
        %p136 = pneg %p135
      $region22: #{neural_network_forward.1} parent=5 // pred_check_branch
        %138 = sbr.rel (%p136) target = $region24
      $region23: #{neural_network_forward.1} parent=5 // pred_region
        // Predicated region
        $region25: #{neural_network_forward.1} parent=23 // pred_check
          %p139 = pneg %p30
        $region26: #{neural_network_forward.1} parent=23 // pred_check_branch
          %141 = sbr.rel (%p139) target = $region28
        $region27: #{neural_network_forward.1} parent=23 // pred_region
          %s142 = smul.u32 2, %s10
          %p143 = scmp.lt.s32.totalorder %s142, 7
          %s144 = scalar_select %p143, %s142, 7
          %s145 = smul.addr %s144, 8
          %s146 = scalar_lea.vmem %s0, %s145
          %s147 = smul.u32 2, %s10
        $region28: #{neural_network_forward.1} parent=23 // pred_fallthru
          _
      $region24: #{neural_network_forward.1} parent=5 // pred_fallthru
        _
      %p148 = scmp.le.s32.totalorder 1, %s10
      %p149 = scmp.lt.s32.totalorder %s10, 5
      %p150 = pnand %p148, %p149
      %p151 = pneg %p150
      // Predicated region
      $region29: #{neural_network_forward.1} parent=5 // pred_check
        _
      $region30: #{neural_network_forward.1} parent=5 // pred_check_branch
        %153 = sbr.rel (%p150) target = $region32
      $region31: #{neural_network_forward.1} parent=5 // pred_region
        %s154 = ssub.s32 %s10, 1
        // Predicated region
        $region33: #{neural_network_forward.1} parent=31 // pred_check
          %p155 = pneg %p57
        $region34: #{neural_network_forward.1} parent=31 // pred_check_branch
          %157 = sbr.rel (%p155) target = $region36
        $region35: #{neural_network_forward.1} parent=31 // pred_region
          %158 = dma.done [#allocation4], 4096
        $region36: #{neural_network_forward.1} parent=31 // pred_fallthru
          _
        %s159 = smul.u32 2, %s15
        %p160 = scmp.lt.s32.totalorder %s159, 7
        %s161 = scalar_select %p160, %s159, 7
        %s162 = smul.addr %s161, 8
        %s163 = scalar_lea.vmem %s0, %s162
        %p164 = pneg %p36
        %p165 = pneg %p33
        %p166 = pneg %p57
        %p167 = pneg %p54
        %p168 = pneg %p78
        %p169 = pneg %p75
        %p170 = pneg %p104
        %p171 = pneg %p101
        %s172 = smul.u32 2, %s15
        %p173 = scmp.lt.s32.totalorder %s172, 7
        %s174 = scalar_select %p173, %s172, 7
        %s175 = smul.addr %s174, 8
        %s176 = scalar_lea.vmem %s3, %s175
        %s177 = smul.u32 2, %s15
        %p178 = scmp.lt.s32.totalorder %s177, 7
        %s179 = scalar_select %p178, %s177, 7
        %s180 = smul.addr %s179, 8
        %s181 = scalar_lea.vmem %s0, %s180
        %s182 = smul.u32 2, %s15
        %s183 = smul.u32 2, %s15
        %p184 = scmp.lt.s32.totalorder %s183, 7
        %s185 = scalar_select %p184, %s183, 7
        %s186 = smul.addr %s185, 8
        %s187 = scalar_lea.vmem %s3, %s186
        %s188 = smul.u32 2, %s15
        %vm190 = vcmask 1047984
        %191 = vst.msk [vmem:[#allocation2] sm:$0xff] %vm190, 0
        %v192 = vld [vmem:[%s181] sm:$0xff]
        %v193 = vld [vmem:[%s181 + $0x8] sm:$0xff]
        %v194 = vpack.c.bf16 %v193, %v192
        %vm195 = vcmask 441344
        %196 = vst.msk [vmem:[#allocation2] sm:$0xff] %vm195, %v194
        %v197 = vld [vmem:[#allocation2] sm:$0xff]
        %v198 = vld [vmem:[#allocation3] sm:$0xf]
        %v199 = vld [vmem:[#allocation3 + $0x4] sm:$0xf]
        %v200 = vld [vmem:[#allocation3 + $0x8] sm:$0xf]
        %v201 = vld [vmem:[#allocation3 + $0xc] sm:$0xf]
        %v202 = vld [vmem:[#allocation3 + $0x10] sm:$0xf]
        %v203 = vld [vmem:[#allocation3 + $0x14] sm:$0xf]
        %v204 = vld [vmem:[#allocation3 + $0x18] sm:$0xf]
        %v205 = vld [vmem:[#allocation3 + $0x1c] sm:$0xf]
        %v206 = vld [vmem:[#allocation3 + $0x20] sm:$0xf]
        %v207 = vld [vmem:[#allocation3 + $0x24] sm:$0xf]
        %v208 = vld [vmem:[#allocation3 + $0x28] sm:$0xf]
        %v209 = vld [vmem:[#allocation3 + $0x2c] sm:$0xf]
        %v210 = vld [vmem:[#allocation3 + $0x30] sm:$0xf]
        %v211 = vld [vmem:[#allocation3 + $0x34] sm:$0xf]
        %v212 = vld [vmem:[#allocation3 + $0x38] sm:$0xf]
        %v213 = vld [vmem:[#allocation3 + $0x3c] sm:$0xf]
        %v214 = vld [vmem:[%s2] sm:$0x1]
        %v216 = vlaneseq
        %v217 = vshrl.u32 %v216, 7
        %v218 = vsub.s32 0, %v217
        %v219 = vrot.slane %v214, %v218
        %v237 = vunpack.c.l.b16 %v198
        %v238 = vunpack.c.l.b16 %v199
        %v239 = vunpack.c.l.b16 %v200
        %v240 = vunpack.c.l.b16 %v201
        %v241 = vunpack.c.l.b16 %v202
        %v242 = vunpack.c.l.b16 %v203
        %v243 = vunpack.c.l.b16 %v204
        %v244 = vunpack.c.l.b16 %v205
        %v245 = vunpack.c.l.b16 %v206
        %v246 = vunpack.c.l.b16 %v207
        %v247 = vunpack.c.l.b16 %v208
        %v248 = vunpack.c.l.b16 %v209
        %v249 = vunpack.c.l.b16 %v210
        %v250 = vunpack.c.l.b16 %v211
        %v251 = vunpack.c.l.b16 %v212
        %v252 = vunpack.c.l.b16 %v213
        %v253 = vpack.c.b16 %v238, %v237
        %v254 = vpack.c.b16 %v240, %v239
        %v255 = vpack.c.b16 %v242, %v241
        %v256 = vpack.c.b16 %v244, %v243
        %v257 = vpack.c.b16 %v246, %v245
        %v258 = vpack.c.b16 %v248, %v247
        %v259 = vpack.c.b16 %v250, %v249
        %v260 = vpack.c.b16 %v252, %v251
        %269 = vmatprep.subr.bf16.mxu0 0
        %270 = vmatpush1.bf16.msra.mxu0 %v253
        %271 = vmatprep.subr.bf16.mxu0 0
        %272 = vmatpush1.bf16.msra.mxu0 %v254
        %273 = vmatprep.subr.bf16.mxu0 0
        %274 = vmatpush1.bf16.msra.mxu0 %v255
        %275 = vmatprep.subr.bf16.mxu0 0
        %276 = vmatpush1.bf16.msra.mxu0 %v256
        %277 = vmatprep.subr.bf16.mxu0 0
        %278 = vmatpush1.bf16.msra.mxu0 %v257
        %279 = vmatprep.subr.bf16.mxu0 0
        %280 = vmatpush1.bf16.msra.mxu0 %v258
        %281 = vmatprep.subr.bf16.mxu0 0
        %282 = vmatpush1.bf16.msra.mxu0 %v259
        %283 = vmatprep.subr.bf16.mxu0 0
        %284 = vmatpush1.bf16.msra.mxu0 %v260
        %285 = vmatprep.subr.bf16.mxu0 0
        %286 = vmatpush1.bf16.msra.mxu0 0
        %287 = vmatprep.subr.bf16.mxu0 0
        %288 = vmatpush1.bf16.msra.mxu0 0
        %289 = vmatprep.subr.bf16.mxu0 0
        %290 = vmatpush1.bf16.msra.mxu0 0
        %291 = vmatprep.subr.bf16.mxu0 0
        %292 = vmatpush1.bf16.msra.mxu0 0
        %293 = vmatprep.subr.bf16.mxu0 0
        %294 = vmatpush1.bf16.msra.mxu0 0
        %295 = vmatprep.subr.bf16.mxu0 0
        %296 = vmatpush1.bf16.msra.mxu0 0
        %297 = vmatprep.subr.bf16.mxu0 0
        %298 = vmatpush1.bf16.msra.mxu0 0
        %299 = vmatprep.subr.bf16.mxu0 0
        %300 = vmatpush1.bf16.msra.mxu0 0
        %301 = vmatprep.mubr.bf16.mxu0 0
        %302 = vmatmul.mubr.bf16.gmra.mrb[0].mxu0 %v197
        %v303 = vpop.f32.mrb[0].mxu0
        %v304 = vadd.f32 %v219, %v303
        %v305 = vpop.f32.mrb[0].mxu0
        %v306 = vpop.f32.mrb[0].mxu0
        %v307 = vadd.f32 %v219, %v306
        %v308 = vpop.f32.mrb[0].mxu0
        %309 = vdwg.mxu0
        %v310 = vmin.f32 %v304, 0.0
        %v311 = vmin.f32 %v307, 0.0
        %v312 = vand.u32 2147483647, %v304
        %v313 = vand.u32 2147483647, %v307
        %v314 = vsub.f32 0.0, %v312
        %v315 = vsub.f32 0.0, %v313
        %v316 = vmul.f32 %v314, 1.442695
        %v317 = vpow.pop %v316
        %v318 = vmul.f32 %v315, 1.442695
        %v319 = vpow.pop %v318
        %v320 = vadd.f32 %v317, 1.0
        %v321 = vlog2.pop %v320
        %v322 = vmul.f32 %v321, 0.6931472
        %v323 = vmul.f32 -0.5, %v317
        %v324 = vadd.f32 %v323, 1.0
        %v325 = vmul.f32 %v324, %v317
        %v326 = vand.u32 2147483647, %v317
        %vm327 = vcmp.lt.f32.partialorder %v326, 0.0004427343
        %v328 = vsel %vm327, %v325, %v322
        %v329 = vadd.f32 %v319, 1.0
        %v330 = vlog2.pop %v329
        %v331 = vmul.f32 %v330, 0.6931472
        %v332 = vmul.f32 -0.5, %v319
        %v333 = vadd.f32 %v332, 1.0
        %v334 = vmul.f32 %v333, %v319
        %v335 = vand.u32 2147483647, %v319
        %vm336 = vcmp.lt.f32.partialorder %v335, 0.0004427343
        %v337 = vsel %vm336, %v334, %v331
        %v338 = vsub.f32 %v310, %v328
        %v339 = vsub.f32 %v311, %v337
        %v340 = vpack.c.bf16 %v339, %v338
        %s341 = scalar_lea.vmem [#allocation3], 64
        %v342 = vld [vmem:[%s341] sm:$0xf]
        %v343 = vld [vmem:[%s341 + $0x4] sm:$0xf]
        %v344 = vld [vmem:[%s341 + $0x8] sm:$0xf]
        %v345 = vld [vmem:[%s341 + $0xc] sm:$0xf]
        %v346 = vld [vmem:[%s341 + $0x10] sm:$0xf]
        %v347 = vld [vmem:[%s341 + $0x14] sm:$0xf]
        %v348 = vld [vmem:[%s341 + $0x18] sm:$0xf]
        %v349 = vld [vmem:[%s341 + $0x1c] sm:$0xf]
        %v350 = vld [vmem:[%s341 + $0x20] sm:$0xf]
        %v351 = vld [vmem:[%s341 + $0x24] sm:$0xf]
        %v352 = vld [vmem:[%s341 + $0x28] sm:$0xf]
        %v353 = vld [vmem:[%s341 + $0x2c] sm:$0xf]
        %v354 = vld [vmem:[%s341 + $0x30] sm:$0xf]
        %v355 = vld [vmem:[%s341 + $0x34] sm:$0xf]
        %v356 = vld [vmem:[%s341 + $0x38] sm:$0xf]
        %v357 = vld [vmem:[%s341 + $0x3c] sm:$0xf]
        %s358 = scalar_lea.vmem %s2, 1
        %v359 = vld [vmem:[%s358] sm:$0x1]
        %v361 = vlaneseq
        %v362 = vshrl.u32 %v361, 7
        %v363 = vsub.s32 0, %v362
        %v364 = vrot.slane %v359, %v363
        %v382 = vunpack.c.l.b16 %v342
        %v383 = vunpack.c.l.b16 %v343
        %v384 = vunpack.c.l.b16 %v344
        %v385 = vunpack.c.l.b16 %v345
        %v386 = vunpack.c.l.b16 %v346
        %v387 = vunpack.c.l.b16 %v347
        %v388 = vunpack.c.l.b16 %v348
        %v389 = vunpack.c.l.b16 %v349
        %v390 = vunpack.c.l.b16 %v350
        %v391 = vunpack.c.l.b16 %v351
        %v392 = vunpack.c.l.b16 %v352
        %v393 = vunpack.c.l.b16 %v353
        %v394 = vunpack.c.l.b16 %v354
        %v395 = vunpack.c.l.b16 %v355
        %v396 = vunpack.c.l.b16 %v356
        %v397 = vunpack.c.l.b16 %v357
        %v398 = vpack.c.b16 %v383, %v382
        %v399 = vpack.c.b16 %v385, %v384
        %v400 = vpack.c.b16 %v387, %v386
        %v401 = vpack.c.b16 %v389, %v388
        %v402 = vpack.c.b16 %v391, %v390
        %v403 = vpack.c.b16 %v393, %v392
        %v404 = vpack.c.b16 %v395, %v394
        %v405 = vpack.c.b16 %v397, %v396
        %414 = vmatprep.subr.bf16.mxu0 0
        %415 = vmatpush1.bf16.msra.mxu0 %v398
        %416 = vmatprep.subr.bf16.mxu0 0
        %417 = vmatpush1.bf16.msra.mxu0 %v399
        %418 = vmatprep.subr.bf16.mxu0 0
        %419 = vmatpush1.bf16.msra.mxu0 %v400
        %420 = vmatprep.subr.bf16.mxu0 0
        %421 = vmatpush1.bf16.msra.mxu0 %v401
        %422 = vmatprep.subr.bf16.mxu0 0
        %423 = vmatpush1.bf16.msra.mxu0 %v402
        %424 = vmatprep.subr.bf16.mxu0 0
        %425 = vmatpush1.bf16.msra.mxu0 %v403
        %426 = vmatprep.subr.bf16.mxu0 0
        %427 = vmatpush1.bf16.msra.mxu0 %v404
        %428 = vmatprep.subr.bf16.mxu0 0
        %429 = vmatpush1.bf16.msra.mxu0 %v405
        %430 = vmatprep.subr.bf16.mxu0 0
        %431 = vmatpush1.bf16.msra.mxu0 0
        %432 = vmatprep.subr.bf16.mxu0 0
        %433 = vmatpush1.bf16.msra.mxu0 0
        %434 = vmatprep.subr.bf16.mxu0 0
        %435 = vmatpush1.bf16.msra.mxu0 0
        %436 = vmatprep.subr.bf16.mxu0 0
        %437 = vmatpush1.bf16.msra.mxu0 0
        %438 = vmatprep.subr.bf16.mxu0 0
        %439 = vmatpush1.bf16.msra.mxu0 0
        %440 = vmatprep.subr.bf16.mxu0 0
        %441 = vmatpush1.bf16.msra.mxu0 0
        %442 = vmatprep.subr.bf16.mxu0 0
        %443 = vmatpush1.bf16.msra.mxu0 0
        %444 = vmatprep.subr.bf16.mxu0 0
        %445 = vmatpush1.bf16.msra.mxu0 0
        %446 = vmatprep.mubr.bf16.mxu0 0
        %447 = vmatmul.mubr.bf16.gmra.mrb[0].mxu0 %v340
        %v448 = vpop.f32.mrb[0].mxu0
        %v449 = vadd.f32 %v364, %v448
        %v450 = vpop.f32.mrb[0].mxu0
        %v451 = vpop.f32.mrb[0].mxu0
        %v452 = vadd.f32 %v364, %v451
        %v453 = vpop.f32.mrb[0].mxu0
        %454 = vdwg.mxu0
        %v455 = vmin.f32 %v449, 0.0
        %v456 = vmin.f32 %v452, 0.0
        %v457 = vand.u32 2147483647, %v449
        %v458 = vand.u32 2147483647, %v452
        %v459 = vsub.f32 0.0, %v457
        %v460 = vsub.f32 0.0, %v458
        %v461 = vmul.f32 %v459, 1.442695
        %v462 = vpow.pop %v461
        %v463 = vmul.f32 %v460, 1.442695
        %v464 = vpow.pop %v463
        %v465 = vadd.f32 %v462, 1.0
        %v466 = vlog2.pop %v465
        %v467 = vmul.f32 %v466, 0.6931472
        %v468 = vmul.f32 -0.5, %v462
        %v469 = vadd.f32 %v468, 1.0
        %v470 = vmul.f32 %v469, %v462
        %v471 = vand.u32 2147483647, %v462
        %vm472 = vcmp.lt.f32.partialorder %v471, 0.0004427343
        %v473 = vsel %vm472, %v470, %v467
        %v474 = vadd.f32 %v464, 1.0
        %v475 = vlog2.pop %v474
        %v476 = vmul.f32 %v475, 0.6931472
        %v477 = vmul.f32 -0.5, %v464
        %v478 = vadd.f32 %v477, 1.0
        %v479 = vmul.f32 %v478, %v464
        %v480 = vand.u32 2147483647, %v464
        %vm481 = vcmp.lt.f32.partialorder %v480, 0.0004427343
        %v482 = vsel %vm481, %v479, %v476
        %v483 = vsub.f32 %v455, %v473
        %v484 = vsub.f32 %v456, %v482
        %v485 = vpack.c.bf16 %v484, %v483
        %s486 = scalar_lea.vmem [#allocation3], 128
        %v487 = vld [vmem:[%s486] sm:$0xf]
        %v488 = vld [vmem:[%s486 + $0x4] sm:$0xf]
        %v489 = vld [vmem:[%s486 + $0x8] sm:$0xf]
        %v490 = vld [vmem:[%s486 + $0xc] sm:$0xf]
        %v491 = vld [vmem:[%s486 + $0x10] sm:$0xf]
        %v492 = vld [vmem:[%s486 + $0x14] sm:$0xf]
        %v493 = vld [vmem:[%s486 + $0x18] sm:$0xf]
        %v494 = vld [vmem:[%s486 + $0x1c] sm:$0xf]
        %v495 = vld [vmem:[%s486 + $0x20] sm:$0xf]
        %v496 = vld [vmem:[%s486 + $0x24] sm:$0xf]
        %v497 = vld [vmem:[%s486 + $0x28] sm:$0xf]
        %v498 = vld [vmem:[%s486 + $0x2c] sm:$0xf]
        %v499 = vld [vmem:[%s486 + $0x30] sm:$0xf]
        %v500 = vld [vmem:[%s486 + $0x34] sm:$0xf]
        %v501 = vld [vmem:[%s486 + $0x38] sm:$0xf]
        %v502 = vld [vmem:[%s486 + $0x3c] sm:$0xf]
        %s503 = scalar_lea.vmem %s2, 2
        %v504 = vld [vmem:[%s503] sm:$0x1]
        %v506 = vlaneseq
        %v507 = vshrl.u32 %v506, 7
        %v508 = vsub.s32 0, %v507
        %v509 = vrot.slane %v504, %v508
        %v527 = vunpack.c.l.b16 %v487
        %v528 = vunpack.c.l.b16 %v488
        %v529 = vunpack.c.l.b16 %v489
        %v530 = vunpack.c.l.b16 %v490
        %v531 = vunpack.c.l.b16 %v491
        %v532 = vunpack.c.l.b16 %v492
        %v533 = vunpack.c.l.b16 %v493
        %v534 = vunpack.c.l.b16 %v494
        %v535 = vunpack.c.l.b16 %v495
        %v536 = vunpack.c.l.b16 %v496
        %v537 = vunpack.c.l.b16 %v497
        %v538 = vunpack.c.l.b16 %v498
        %v539 = vunpack.c.l.b16 %v499
        %v540 = vunpack.c.l.b16 %v500
        %v541 = vunpack.c.l.b16 %v501
        %v542 = vunpack.c.l.b16 %v502
        %v543 = vpack.c.b16 %v528, %v527
        %v544 = vpack.c.b16 %v530, %v529
        %v545 = vpack.c.b16 %v532, %v531
        %v546 = vpack.c.b16 %v534, %v533
        %v547 = vpack.c.b16 %v536, %v535
        %v548 = vpack.c.b16 %v538, %v537
        %v549 = vpack.c.b16 %v540, %v539
        %v550 = vpack.c.b16 %v542, %v541
        %559 = vmatprep.subr.bf16.mxu0 0
        %560 = vmatpush1.bf16.msra.mxu0 %v543
        %561 = vmatprep.subr.bf16.mxu0 0
        %562 = vmatpush1.bf16.msra.mxu0 %v544
        %563 = vmatprep.subr.bf16.mxu0 0
        %564 = vmatpush1.bf16.msra.mxu0 %v545
        %565 = vmatprep.subr.bf16.mxu0 0
        %566 = vmatpush1.bf16.msra.mxu0 %v546
        %567 = vmatprep.subr.bf16.mxu0 0
        %568 = vmatpush1.bf16.msra.mxu0 %v547
        %569 = vmatprep.subr.bf16.mxu0 0
        %570 = vmatpush1.bf16.msra.mxu0 %v548
        %571 = vmatprep.subr.bf16.mxu0 0
        %572 = vmatpush1.bf16.msra.mxu0 %v549
        %573 = vmatprep.subr.bf16.mxu0 0
        %574 = vmatpush1.bf16.msra.mxu0 %v550
        %575 = vmatprep.subr.bf16.mxu0 0
        %576 = vmatpush1.bf16.msra.mxu0 0
        %577 = vmatprep.subr.bf16.mxu0 0
        %578 = vmatpush1.bf16.msra.mxu0 0
        %579 = vmatprep.subr.bf16.mxu0 0
        %580 = vmatpush1.bf16.msra.mxu0 0
        %581 = vmatprep.subr.bf16.mxu0 0
        %582 = vmatpush1.bf16.msra.mxu0 0
        %583 = vmatprep.subr.bf16.mxu0 0
        %584 = vmatpush1.bf16.msra.mxu0 0
        %585 = vmatprep.subr.bf16.mxu0 0
        %586 = vmatpush1.bf16.msra.mxu0 0
        %587 = vmatprep.subr.bf16.mxu0 0
        %588 = vmatpush1.bf16.msra.mxu0 0
        %589 = vmatprep.subr.bf16.mxu0 0
        %590 = vmatpush1.bf16.msra.mxu0 0
        %591 = vmatprep.mubr.bf16.mxu0 0
        %592 = vmatmul.mubr.bf16.gmra.mrb[0].mxu0 %v485
        %v593 = vpop.f32.mrb[0].mxu0
        %v594 = vadd.f32 %v509, %v593
        %v595 = vpop.f32.mrb[0].mxu0
        %v596 = vpop.f32.mrb[0].mxu0
        %v597 = vadd.f32 %v509, %v596
        %v598 = vpop.f32.mrb[0].mxu0
        %599 = vdwg.mxu0
        %v600 = vmin.f32 %v594, 0.0
        %v601 = vmin.f32 %v597, 0.0
        %v602 = vand.u32 2147483647, %v594
        %v603 = vand.u32 2147483647, %v597
        %v604 = vsub.f32 0.0, %v602
        %v605 = vsub.f32 0.0, %v603
        %v606 = vmul.f32 %v604, 1.442695
        %v607 = vpow.pop %v606
        %v608 = vmul.f32 %v605, 1.442695
        %v609 = vpow.pop %v608
        %v610 = vadd.f32 %v607, 1.0
        %v611 = vlog2.pop %v610
        %v612 = vmul.f32 %v611, 0.6931472
        %v613 = vmul.f32 -0.5, %v607
        %v614 = vadd.f32 %v613, 1.0
        %v615 = vmul.f32 %v614, %v607
        %v616 = vand.u32 2147483647, %v607
        %vm617 = vcmp.lt.f32.partialorder %v616, 0.0004427343
        %v618 = vsel %vm617, %v615, %v612
        %v619 = vadd.f32 %v609, 1.0
        %v620 = vlog2.pop %v619
        %v621 = vmul.f32 %v620, 0.6931472
        %v622 = vmul.f32 -0.5, %v609
        %v623 = vadd.f32 %v622, 1.0
        %v624 = vmul.f32 %v623, %v609
        %v625 = vand.u32 2147483647, %v609
        %vm626 = vcmp.lt.f32.partialorder %v625, 0.0004427343
        %v627 = vsel %vm626, %v624, %v621
        %v628 = vsub.f32 %v600, %v618
        %v629 = vsub.f32 %v601, %v627
        %v630 = vpack.c.bf16 %v629, %v628
        %s631 = scalar_lea.vmem [#allocation3], 192
        %v632 = vld [vmem:[%s631] sm:$0xf]
        %v633 = vld [vmem:[%s631 + $0x4] sm:$0xf]
        %v634 = vld [vmem:[%s631 + $0x8] sm:$0xf]
        %v635 = vld [vmem:[%s631 + $0xc] sm:$0xf]
        %v636 = vld [vmem:[%s631 + $0x10] sm:$0xf]
        %v637 = vld [vmem:[%s631 + $0x14] sm:$0xf]
        %v638 = vld [vmem:[%s631 + $0x18] sm:$0xf]
        %v639 = vld [vmem:[%s631 + $0x1c] sm:$0xf]
        %v640 = vld [vmem:[%s631 + $0x20] sm:$0xf]
        %v641 = vld [vmem:[%s631 + $0x24] sm:$0xf]
        %v642 = vld [vmem:[%s631 + $0x28] sm:$0xf]
        %v643 = vld [vmem:[%s631 + $0x2c] sm:$0xf]
        %v644 = vld [vmem:[%s631 + $0x30] sm:$0xf]
        %v645 = vld [vmem:[%s631 + $0x34] sm:$0xf]
        %v646 = vld [vmem:[%s631 + $0x38] sm:$0xf]
        %v647 = vld [vmem:[%s631 + $0x3c] sm:$0xf]
        %s648 = scalar_lea.vmem %s2, 3
        %v649 = vld [vmem:[%s648] sm:$0x1]
        %v651 = vlaneseq
        %v652 = vshrl.u32 %v651, 7
        %v653 = vsub.s32 0, %v652
        %v654 = vrot.slane %v649, %v653
        %v672 = vunpack.c.l.b16 %v632
        %v673 = vunpack.c.l.b16 %v633
        %v674 = vunpack.c.l.b16 %v634
        %v675 = vunpack.c.l.b16 %v635
        %v676 = vunpack.c.l.b16 %v636
        %v677 = vunpack.c.l.b16 %v637
        %v678 = vunpack.c.l.b16 %v638
        %v679 = vunpack.c.l.b16 %v639
        %v680 = vunpack.c.l.b16 %v640
        %v681 = vunpack.c.l.b16 %v641
        %v682 = vunpack.c.l.b16 %v642
        %v683 = vunpack.c.l.b16 %v643
        %v684 = vunpack.c.l.b16 %v644
        %v685 = vunpack.c.l.b16 %v645
        %v686 = vunpack.c.l.b16 %v646
        %v687 = vunpack.c.l.b16 %v647
        %v688 = vpack.c.b16 %v673, %v672
        %v689 = vpack.c.b16 %v675, %v674
        %v690 = vpack.c.b16 %v677, %v676
        %v691 = vpack.c.b16 %v679, %v678
        %v692 = vpack.c.b16 %v681, %v680
        %v693 = vpack.c.b16 %v683, %v682
        %v694 = vpack.c.b16 %v685, %v684
        %v695 = vpack.c.b16 %v687, %v686
        %704 = vmatprep.subr.bf16.mxu0 0
        %705 = vmatpush1.bf16.msra.mxu0 %v688
        %706 = vmatprep.subr.bf16.mxu0 0
        %707 = vmatpush1.bf16.msra.mxu0 %v689
        %708 = vmatprep.subr.bf16.mxu0 0
        %709 = vmatpush1.bf16.msra.mxu0 %v690
        %710 = vmatprep.subr.bf16.mxu0 0
        %711 = vmatpush1.bf16.msra.mxu0 %v691
        %712 = vmatprep.subr.bf16.mxu0 0
        %713 = vmatpush1.bf16.msra.mxu0 %v692
        %714 = vmatprep.subr.bf16.mxu0 0
        %715 = vmatpush1.bf16.msra.mxu0 %v693
        %716 = vmatprep.subr.bf16.mxu0 0
        %717 = vmatpush1.bf16.msra.mxu0 %v694
        %718 = vmatprep.subr.bf16.mxu0 0
        %719 = vmatpush1.bf16.msra.mxu0 %v695
        %720 = vmatprep.subr.bf16.mxu0 0
        %721 = vmatpush1.bf16.msra.mxu0 0
        %722 = vmatprep.subr.bf16.mxu0 0
        %723 = vmatpush1.bf16.msra.mxu0 0
        %724 = vmatprep.subr.bf16.mxu0 0
        %725 = vmatpush1.bf16.msra.mxu0 0
        %726 = vmatprep.subr.bf16.mxu0 0
        %727 = vmatpush1.bf16.msra.mxu0 0
        %728 = vmatprep.subr.bf16.mxu0 0
        %729 = vmatpush1.bf16.msra.mxu0 0
        %730 = vmatprep.subr.bf16.mxu0 0
        %731 = vmatpush1.bf16.msra.mxu0 0
        %732 = vmatprep.subr.bf16.mxu0 0
        %733 = vmatpush1.bf16.msra.mxu0 0
        %734 = vmatprep.subr.bf16.mxu0 0
        %735 = vmatpush1.bf16.msra.mxu0 0
        %736 = vmatprep.mubr.bf16.mxu0 0
        %737 = vmatmul.mubr.bf16.gmra.mrb[0].mxu0 %v630
        %v738 = vpop.f32.mrb[0].mxu0
        %v739 = vadd.f32 %v654, %v738
        %v740 = vpop.f32.mrb[0].mxu0
        %v741 = vpop.f32.mrb[0].mxu0
        %v742 = vadd.f32 %v654, %v741
        %v743 = vpop.f32.mrb[0].mxu0
        %744 = vdwg.mxu0
        %vm745 = vcmask 162816
        %746 = vst.msk [vmem:[%s187] sm:$0xff] %vm745, %v739
        %747 = vst.msk [vmem:[%s187 + $0x8] sm:$0xff] %vm745, %v742
        %s748 = smul.u32 2, %s15
        %p749 = scmp.lt.s32.totalorder %s748, 7
        %s750 = scalar_select %p749, %s748, 7
        %s751 = smul.addr %s750, 8
        %s752 = scalar_lea.vmem %s3, %s751
        // Predicated region
        $region37: #{neural_network_forward.1} parent=31 // pred_check
          %p753 = pneg %p101
        $region38: #{neural_network_forward.1} parent=31 // pred_check_branch
          %755 = sbr.rel (%p753) target = $region40
        $region39: #{neural_network_forward.1} parent=31 // pred_region
          %s756 = smul.u32 2, %s15
        $region40: #{neural_network_forward.1} parent=31 // pred_fallthru
          _
      $region32: #{neural_network_forward.1} parent=5 // pred_fallthru
        _
      %p757 = scmp.le.s32.totalorder 2, %s10
      // Predicated region
      $region41: #{neural_network_forward.1} parent=5 // pred_check
        %p758 = pneg %p757
      $region42: #{neural_network_forward.1} parent=5 // pred_check_branch
        %760 = sbr.rel (%p758) target = $region44
      $region43: #{neural_network_forward.1} parent=5 // pred_region
        %s761 = ssub.s32 %s10, 2
        // Predicated region
        $region45: #{neural_network_forward.1} parent=43 // pred_check
          %p762 = pneg %p107
        $region46: #{neural_network_forward.1} parent=43 // pred_check_branch
          %764 = sbr.rel (%p762) target = $region48
        $region47: #{neural_network_forward.1} parent=43 // pred_region
          %s765 = smul.u32 2, %s16
          %p766 = scmp.lt.s32.totalorder %s765, 7
          %s767 = scalar_select %p766, %s765, 7
          %s768 = smul.addr %s767, 8
          %s769 = scalar_lea.vmem %s3, %s768
        $region48: #{neural_network_forward.1} parent=43 // pred_fallthru
          _
      $region44: #{neural_network_forward.1} parent=5 // pred_fallthru
        _
    $region6: #{neural_network_forward.1} parent=1 // loop_footer
      %s14 = sadd.s32 1, %s10
    $region7: #{neural_network_forward.1} parent=1 // loop_footer_branch
      %9 = sbr.rel target = $region3
    $region8: #{neural_network_forward.1} parent=1 // loop_exit
      _
    %770 = vsyncpa [#allocation4], 1
    %s771 = scalar_lea.sflag [#allocation4], 1
    %772 = vsyncpa %s771, 1

</llo_original>
